<compile_context>
chip_gen: v5e
topology: v5e:2x2
jax: 0.10.0
libtpu: 0.0.40
codegen_flags: <defaults>
</compile_context>

<pallas_src>
import functools
import math

import numpy as np

import jax
import jax.numpy as jnp
from jax.experimental import pallas as pl
from jax.experimental.pallas import tpu as pltpu


PARAM_ORDER = [
    "wq", "bq", "wo_sa", "bo_sa", "g_sa", "be_sa",
    "w_ox", "b_ox", "w_oy", "b_oy", "w_aw", "b_aw", "w_out", "b_out",
    "g_ca", "be_ca",
    "w1", "b1", "w2", "b2",
    "g3", "be3",
]


def _layer_norm(x, g, b, eps=1e-5):
    mu = jnp.mean(x, axis=-1, keepdims=True)
    var = jnp.mean(jnp.square(x - mu), axis=-1, keepdims=True)
    return (x - mu) * jax.lax.rsqrt(var + eps) * g + b


def _vmem_limit_bytes():
    # v5e/v6e (128 MiB physical) -> 64 MiB, v7x (64 MiB physical) -> 32 MiB.
    try:
        cap = int(getattr(pltpu.get_tpu_info(), "vmem_capacity_bytes", 0)) or 64 * 1024 * 1024
    except Exception:
        cap = 64 * 1024 * 1024
    return int(min(96 * 1024 * 1024, max(32 * 1024 * 1024, cap // 2)))


def _const_spec(a):
    nd = a.ndim
    return pl.BlockSpec(a.shape, lambda b, t, _nd=nd: (0,) * _nd)


# -----------------------------------------------------------------------------
# Kernel 1: hoisted MSDeformAttn value projection of the memory (tiled over L)
# -----------------------------------------------------------------------------
def value_proj_kernel(src_ref, mask_ref, w_ref, b_ref, out_ref):
    v = jnp.dot(src_ref[0].astype(jnp.bfloat16), w_ref[...],
                preferred_element_type=jnp.float32) + b_ref[...]
    v = v * (1.0 - mask_ref[0])                        # masked_fill(mask, 0)
    out_ref[0] = v.astype(jnp.bfloat16)


def value_projection(src, mask, w_v_bf16, b_v, *, tl):
    bs, L, C = src.shape
    assert L % tl == 0, "memory tile must divide (padded) memory length"
    return pl.pallas_call(
        value_proj_kernel,
        out_shape=jax.ShapeDtypeStruct((bs, L, C), jnp.bfloat16),
        grid=(bs, L // tl),
        in_specs=[
            pl.BlockSpec((1, tl, C), lambda b, l: (b, l, 0)),
            pl.BlockSpec((1, tl, 1), lambda b, l: (b, l, 0)),
            pl.BlockSpec((C, C), lambda b, l: (0, 0)),
            pl.BlockSpec((1, C), lambda b, l: (0, 0)),
        ],
        out_specs=pl.BlockSpec((1, tl, C), lambda b, l: (b, l, 0)),
        compiler_params=pltpu.CompilerParams(
            dimension_semantics=("parallel", "parallel")),
    )(src, mask, w_v_bf16, b_v)


# -----------------------------------------------------------------------------
# Kernel 2: hoisted self-attention K/V projection of the full query sequence
# -----------------------------------------------------------------------------
def sa_kv_kernel(tgt_ref, qpos_ref, wk_ref, bk_ref, wv_ref, bv_ref, k_out, v_out):
    t = tgt_ref[0]
    k = jnp.dot((t + qpos_ref[0]).astype(jnp.bfloat16), wk_ref[...],
                preferred_element_type=jnp.float32) + bk_ref[...]
    v = jnp.dot(t.astype(jnp.bfloat16), wv_ref[...],
                preferred_element_type=jnp.float32) + bv_ref[...]
    k_out[0] = k.astype(jnp.bfloat16)
    v_out[0] = v.astype(jnp.bfloat16)


def sa_kv_projection(tgt, qpos, wk, bk, wv, bv, *, tq):
    bs, nq, C = tgt.shape
    assert nq % tq == 0
    return pl.pallas_call(
        sa_kv_kernel,
        out_shape=(jax.ShapeDtypeStruct((bs, nq, C), jnp.bfloat16),
                   jax.ShapeDtypeStruct((bs, nq, C), jnp.bfloat16)),
        grid=(bs, nq // tq),
        in_specs=[
            pl.BlockSpec((1, tq, C), lambda b, t: (b, t, 0)),
            pl.BlockSpec((1, tq, C), lambda b, t: (b, t, 0)),
            pl.BlockSpec((C, C), lambda b, t: (0, 0)),
            pl.BlockSpec((1, C), lambda b, t: (0, 0)),
            pl.BlockSpec((C, C), lambda b, t: (0, 0)),
            pl.BlockSpec((1, C), lambda b, t: (0, 0)),
        ],
        out_specs=(pl.BlockSpec((1, tq, C), lambda b, t: (b, t, 0)),
                   pl.BlockSpec((1, tq, C), lambda b, t: (b, t, 0))),
        compiler_params=pltpu.CompilerParams(
            dimension_semantics=("parallel", "parallel")),
    )(tgt, qpos, wk, bk, wv, bv)


# -----------------------------------------------------------------------------
# Kernel 3: one decoder layer for one (batch, query-tile) grid point
# -----------------------------------------------------------------------------
def decoder_layer_kernel(*refs, spatial_shapes, level_start, n_heads, n_levels,
                         n_points, head_dim, tq, ref_dim):
    f32 = jnp.float32
    bf16 = jnp.bfloat16

    (tgt_t_ref, qpos_t_ref, ref_t_ref, k_full_ref, v_full_ref,
     val_ref, wvec_ref, hvec_ref, g_ref, gt_ref) = refs[:10]
    e_refs = refs[10:10 + n_levels]
    f_refs = refs[10 + n_levels:10 + 2 * n_levels]
    p = refs[10 + 2 * n_levels:]
    (wq, bq, wo_sa, bo_sa, g_sa, be_sa,
     w_ox, b_ox, w_oy, b_oy, w_aw, b_aw, w_out, b_out, g_ca, be_ca,
     w1, b1, w2, b2, g3, be3) = p[:22]
    out_ref = p[22]

    tgt_t = tgt_t_ref[0]                               # (tq, C) f32
    qpos_t = qpos_t_ref[0]                             # (tq, C) f32
    ref_t = ref_t_ref[0]                               # (tq, R) f32
    k_all = k_full_ref[0]                              # (nq, C) bf16 (hoisted)
    v_all = v_full_ref[0]                              # (nq, C) bf16 (hoisted)

    # ----------------------- query self-attention ---------------------------
    q_p = jnp.dot((tgt_t + qpos_t).astype(bf16), wq[...],
                  preferred_element_type=f32) + bq[...]
    scale = 1.0 / math.sqrt(head_dim)
    sa_heads = []
    for h in range(n_heads):
        hs = h * head_dim
        qh = (q_p[:, hs:hs + head_dim] * scale).astype(bf16)
        kh = k_all[:, hs:hs + head_dim]
        vh = v_all[:, hs:hs + head_dim]
        s = jax.lax.dot_general(qh, kh, (((1,), (1,)), ((), ())),
                                preferred_element_type=f32)          # (tq, nq)
        m = jnp.max(s, axis=-1, keepdims=True)
        e = jnp.exp(s - m)
        prob = e * pl.reciprocal(jnp.sum(e, axis=-1, keepdims=True), approx=True)
        sa_heads.append(jnp.dot(prob.astype(bf16), vh, preferred_element_type=f32))
    sa_cat = jnp.concatenate(sa_heads, axis=-1)        # single lane-dense slab
    sa_out = jnp.dot(sa_cat.astype(bf16), wo_sa[...],
                     preferred_element_type=f32) + bo_sa[...]
    x = _layer_norm(tgt_t + sa_out, g_sa[...], be_sa[...])

    # ----------------------- MSDeformAttn cross-attention -------------------
    q_bf = (x + qpos_t).astype(bf16)
    off_x = jnp.dot(q_bf, w_ox[...], preferred_element_type=f32) + b_ox[...]   # (tq, HLP)
    off_y = jnp.dot(q_bf, w_oy[...], preferred_element_type=f32) + b_oy[...]
    logits = jnp.dot(q_bf, w_aw[...], preferred_element_type=f32) + b_aw[...]

    # per-head softmax over (levels*points), lane-dense via segment matmuls:
    # subtracting the per-row global max is exact per segment; denominators are
    # gathered with G (HLP, n_heads) and broadcast back with G^T.
    m = jnp.max(logits, axis=-1, keepdims=True)
    e = jnp.exp(logits - m)
    denom = jnp.dot(jnp.dot(e, g_ref[...], preferred_element_type=f32),
                    gt_ref[...], preferred_element_type=f32)
    aw_all = e * pl.reciprocal(jnp.maximum(denom, 1e-30), approx=True)  # (tq, HLP)

    # lane-dense sampling coordinates for ALL heads/levels/points at once.
    # grid_sample(align_corners=False): pixel = loc * size - 0.5
    wvec = wvec_ref[...]                                # (1, HLP)
    hvec = hvec_ref[...]
    refx = ref_t[:, 0:1]
    refy = ref_t[:, 1:2]
    if ref_dim == 4:
        refw = ref_t[:, 2:3]
        refh = ref_t[:, 3:4]
        px = (refx + off_x * refw * (0.5 / n_points)) * wvec - 0.5
        py = (refy + off_y * refh * (0.5 / n_points)) * hvec - 0.5
    else:
        px = refx * wvec + off_x - 0.5
        py = refy * hvec + off_y - 0.5

    # hoisted per-level constants (bf16 spread matrices, f32 iotas)
    e_mats = [e_refs[l][...] for l in range(n_levels)]          # (H, Lp) bf16
    f_mats = [f_refs[l][...] for l in range(n_levels)]          # (W, Lp) bf16
    iota_r = [jax.lax.broadcasted_iota(f32, (tq, spatial_shapes[l][0]), 1)
              for l in range(n_levels)]
    iota_c = [jax.lax.broadcasted_iota(f32, (tq, spatial_shapes[l][1]), 1)
              for l in range(n_levels)]

    ca_heads = []
    for h in range(n_heads):
        hs = h * head_dim
        acc_h = jnp.zeros((tq, head_dim), f32)
        for lvl in range(n_levels):
            Lp = e_mats[lvl].shape[1]
            start = level_start[lvl]
            v_lvl_h = val_ref[0, start:start + Lp, hs:hs + head_dim]   # bf16
            A = jnp.zeros((tq, Lp), f32)
            for pt in range(n_points):
                col = (h * n_levels + lvl) * n_points + pt
                py_c = py[:, col:col + 1]
                px_c = px[:, col:col + 1]
                aw_c = aw_all[:, col:col + 1]
                # separable bilinear weights as triangular hat functions over all
                # rows/cols; OOB corners get zero weight automatically (matches
                # grid_sample padding_mode='zeros', align_corners=False).
                rowv = jnp.maximum(1.0 - jnp.abs(iota_r[lvl] - py_c), 0.0) * aw_c
                colv = jnp.maximum(1.0 - jnp.abs(iota_c[lvl] - px_c), 0.0)
                A = A + (jnp.dot(rowv.astype(bf16), e_mats[lvl],
                                 preferred_element_type=f32)
                         * jnp.dot(colv.astype(bf16), f_mats[lvl],
                                   preferred_element_type=f32))
            # TODO(synk): at production Llvl (~13k) keep A in bf16 (or fold the
            # value matmul into the point loop) to avoid f32 spill traffic.
            acc_h = acc_h + jnp.dot(A.astype(bf16), v_lvl_h,
                                    preferred_element_type=f32)
        ca_heads.append(acc_h)
    ca_cat = jnp.concatenate(ca_heads, axis=-1)         # single lane-dense slab
    ca_out = jnp.dot(ca_cat.astype(bf16), w_out[...],
                     preferred_element_type=f32) + b_out[...]
    y = _layer_norm(x + ca_out, g_ca[...], be_ca[...])

    # ----------------------- FFN ---------------------------------------------
    h1 = jnp.maximum(
        jnp.dot(y.astype(bf16), w1[...], preferred_element_type=f32) + b1[...], 0.0)
    h2 = jnp.dot(h1.astype(bf16), w2[...], preferred_element_type=f32) + b2[...]
    out_ref[0] = _layer_norm(y + h2, g3[...], be3[...])


def decoder_layer_forward(tgt, query_pos, reference_points, k_sa, v_sa, value,
                          params, consts, *, spatial_shapes, level_start,
                          n_heads, n_levels, n_points, tq):
    bs, nq, C = tgt.shape
    L = value.shape[1]
    ref_dim = reference_points.shape[-1]
    head_dim = C // n_heads
    assert nq % tq == 0, "query tile must divide number of queries"
    wvec, hvec, gmat, gmat_t, e_mats, f_mats = consts

    kernel = functools.partial(
        decoder_layer_kernel,
        spatial_shapes=spatial_shapes, level_start=level_start,
        n_heads=n_heads, n_levels=n_levels, n_points=n_points,
        head_dim=head_dim, tq=tq, ref_dim=ref_dim)

    inputs = [tgt, query_pos, reference_points,          # query-tile views
              k_sa, v_sa,                                # hoisted self-attn K/V
              value, wvec, hvec, gmat, gmat_t]
    inputs += list(e_mats) + list(f_mats)
    inputs += [params[k] for k in PARAM_ORDER]

    in_specs = [
        pl.BlockSpec((1, tq, C), lambda b, t: (b, t, 0)),         # tgt tile
        pl.BlockSpec((1, tq, C), lambda b, t: (b, t, 0)),         # query_pos tile
        pl.BlockSpec((1, tq, ref_dim), lambda b, t: (b, t, 0)),   # ref tile
        pl.BlockSpec((1, nq, C), lambda b, t: (b, 0, 0)),         # K full (bf16)
        pl.BlockSpec((1, nq, C), lambda b, t: (b, 0, 0)),         # V full (bf16)
        pl.BlockSpec((1, L, C), lambda b, t: (b, 0, 0)),          # value slab (bf16)
    ]
    in_specs += [_const_spec(a) for a in inputs[6:]]

    return pl.pallas_call(
        kernel,
        out_shape=jax.ShapeDtypeStruct((bs, nq, C), jnp.float32),
        grid=(bs, nq // tq),
        in_specs=in_specs,
        out_specs=pl.BlockSpec((1, tq, C), lambda b, t: (b, t, 0)),
        compiler_params=pltpu.CompilerParams(
            dimension_semantics=("parallel", "parallel"),
            vmem_limit_bytes=_vmem_limit_bytes()),
    )(*inputs)


# -----------------------------------------------------------------------------
# Host-built constants / level padding
# -----------------------------------------------------------------------------
def pad_levels(src, mask, spatial_shapes, level_start):
    """Pad each level's flattened length up to a multiple of 8 so level slices
    of the value slab stay (8,128) sublane aligned.  Padded rows are masked."""
    bs, _, C = src.shape
    pieces_s, pieces_m, starts, padded_lens = [], [], [], []
    cur = 0
    for lvl, (H_, W_) in enumerate(spatial_shapes):
        L_ = H_ * W_
        Lp = ((L_ + 7) // 8) * 8
        ls = level_start[lvl]
        s = src[:, ls:ls + L_]
        m = mask[:, ls:ls + L_]
        if Lp > L_:
            s = jnp.concatenate([s, jnp.zeros((bs, Lp - L_, C), src.dtype)], axis=1)
            m = jnp.concatenate([m, jnp.ones((bs, Lp - L_, 1), mask.dtype)], axis=1)
        pieces_s.append(s)
        pieces_m.append(m)
        starts.append(cur)
        padded_lens.append(Lp)
        cur += Lp
    return (jnp.concatenate(pieces_s, axis=1), jnp.concatenate(pieces_m, axis=1),
            tuple(starts), tuple(padded_lens))


def build_sampling_consts(spatial_shapes, padded_lens, n_heads, n_levels, n_points):
    LvP = n_levels * n_points
    HLP = n_heads * LvP
    wv = np.zeros((1, HLP), np.float32)
    hv = np.zeros((1, HLP), np.float32)
    for h in range(n_heads):
        for lvl, (H_, W_) in enumerate(spatial_shapes):
            for p in range(n_points):
                col = (h * n_levels + lvl) * n_points + p
                wv[0, col] = float(W_)
                hv[0, col] = float(H_)
    # head-segment one-hot matrices for the lane-dense per-head softmax
    gm = (np.arange(HLP)[:, None] // LvP == np.arange(n_heads)[None, :]).astype(np.float32)
    # bf16 spread matrices (exact 0/1), padded columns are all-zero
    e_mats, f_mats = [], []
    for lvl, (H_, W_) in enumerate(spatial_shapes):
        Lp = padded_lens[lvl]
        j = np.arange(Lp)
        valid = (j < H_ * W_)
        e = ((j[None, :] // W_ == np.arange(H_)[:, None]) & valid[None, :]).astype(np.float32)
        f = ((j[None, :] % W_ == np.arange(W_)[:, None]) & valid[None, :]).astype(np.float32)
        e_mats.append(jnp.asarray(e, jnp.bfloat16))
        f_mats.append(jnp.asarray(f, jnp.bfloat16))
    return (jnp.asarray(wv), jnp.asarray(hv),
            jnp.asarray(gm), jnp.asarray(gm.T), e_mats, f_mats)


# -----------------------------------------------------------------------------
# Plain-JAX glue: DAB MLPs + parameter init + decoder loop
# -----------------------------------------------------------------------------
def mlp_forward(layers, x):
    n = len(layers)
    for i, (w, b) in enumerate(layers):
        x = x @ w + b
        if i < n - 1:
            x = jax.nn.relu(x)
    return x


def init_mlp(key, dims):
    layers = []
    ks = jax.random.split(key, len(dims) - 1)
    for k, fan_in, fan_out in zip(ks, dims[:-1], dims[1:]):
        w = jax.random.normal(k, (fan_in, fan_out), jnp.float32) / math.sqrt(fan_in)
        b = jnp.zeros((fan_out,), jnp.float32)
        layers.append((w, b))
    return layers


def init_layer_params(key, C, d_ffn, n_heads, n_levels, n_points):
    HLP = n_heads * n_levels * n_points
    ks = iter(jax.random.split(key, 16))

    def lin(fan_in, fan_out, scale=None, dtype=jnp.float32):
        s = scale if scale is not None else 1.0 / math.sqrt(fan_in)
        w = (jax.random.normal(next(ks), (fan_in, fan_out), jnp.float32) * s).astype(dtype)
        b = jnp.zeros((1, fan_out), jnp.float32)
        return w, b

    p = {}
    # self-attention (separate Q/K/V/O, equivalent to nn.MultiheadAttention in_proj)
    p["wq"], p["bq"] = lin(C, C, dtype=jnp.bfloat16)
    p["wk"], p["bk"] = lin(C, C, dtype=jnp.bfloat16)
    p["wv_sa"], p["bv_sa"] = lin(C, C, dtype=jnp.bfloat16)
    p["wo_sa"], p["bo_sa"] = lin(C, C, dtype=jnp.bfloat16)
    p["g_sa"], p["be_sa"] = jnp.ones((1, C), jnp.float32), jnp.zeros((1, C), jnp.float32)
    # MSDeformAttn: value proj (hoisted kernel), sampling offsets (x / y columns
    # stored separately), attention weights, out proj
    p["w_v"], p["b_v"] = lin(C, C, dtype=jnp.bfloat16)
    p["w_ox"], p["b_ox"] = lin(C, HLP, scale=0.02, dtype=jnp.bfloat16)
    p["w_oy"], p["b_oy"] = lin(C, HLP, scale=0.02, dtype=jnp.bfloat16)
    p["w_aw"], p["b_aw"] = lin(C, HLP, dtype=jnp.bfloat16)
    p["w_out"], p["b_out"] = lin(C, C, dtype=jnp.bfloat16)
    p["g_ca"], p["be_ca"] = jnp.ones((1, C), jnp.float32), jnp.zeros((1, C), jnp.float32)
    # FFN
    p["w1"], p["b1"] = lin(C, d_ffn, dtype=jnp.bfloat16)
    p["w2"], p["b2"] = lin(d_ffn, C, dtype=jnp.bfloat16)
    p["g3"], p["be3"] = jnp.ones((1, C), jnp.float32), jnp.zeros((1, C), jnp.float32)
    return p


def deformable_transformer_decoder(
        tgt, reference_points, src, src_padding_mask,
        layer_params, ref_point_head_params, query_scale_params, *,
        spatial_shapes, level_start, n_heads, n_levels, n_points,
        use_dab=True, query_pos=None, tq=None, tl_mem=None,
        box_src=None, box_src_spatial_shapes=None, box_src_level_start_index=None):
    """Mirrors DeformableTransformerDecoder.forward (eval, bbox_embed=None,
    return_intermediate=False)."""
    # TODO(synk): box_src second-memory branch / self_attn_mask of the unprovided
    # DeformableTransformerDecoderLayer are not implemented; src_pos is unused.
    del box_src, box_src_spatial_shapes, box_src_level_start_index

    mask = src_padding_mask.astype(jnp.float32)[..., None]          # (bs, L, 1)
    src_p, mask_p, level_start_pad, padded_lens = pad_levels(
        src, mask, spatial_shapes, level_start)
    consts = build_sampling_consts(spatial_shapes, padded_lens,
                                   n_heads, n_levels, n_points)

    nq = tgt.shape[1]
    tq = nq if tq is None else tq
    L_pad = src_p.shape[1]
    tl = L_pad if tl_mem is None else tl_mem

    output = tgt
    for lid, params in enumerate(layer_params):
        if use_dab:
            # no_sine_embed=True: MLP over the raw reference points
            raw_query_pos = mlp_forward(ref_point_head_params, reference_points)
            pos_scale = mlp_forward(query_scale_params, output) if lid != 0 else 1.0
            qp = pos_scale * raw_query_pos
        else:
            qp = query_pos
        # hoisted, memory-tiled value projection (per-layer W_v)
        value = value_projection(src_p, mask_p, params["w_v"], params["b_v"], tl=tl)
        # hoisted self-attention K/V projection of the full query sequence
        k_sa, v_sa = sa_kv_projection(output, qp, params["wk"], params["bk"],
                                      params["wv_sa"], params["bv_sa"], tq=tq)
        output = decoder_layer_forward(
            output, qp, reference_points, k_sa, v_sa, value, params, consts,
            spatial_shapes=spatial_shapes, level_start=level_start_pad,
            n_heads=n_heads, n_levels=n_levels, n_points=n_points, tq=tq)
    # bbox_embed is None -> reference points are returned unchanged
    return output, reference_points


# -----------------------------------------------------------------------------
if __name__ == "__main__":
    key = jax.random.PRNGKey(0)

    bs = 2
    C = 32                        # d_model
    d_ffn = 64
    n_heads = 4
    n_levels = 2
    n_points = 2
    num_layers = 2
    nq = 16                       # number of object queries
    R = 4                         # DAB: (cx, cy, w, h) reference points
    spatial_shapes = ((8, 8), (4, 4))
    level_start = (0, 64)
    L = sum(h * w for h, w in spatial_shapes)     # 80

    ks = jax.random.split(key, 6)
    tgt = jax.random.normal(ks[0], (bs, nq, C), jnp.float32)
    src = jax.random.normal(ks[1], (bs, L, C), jnp.float32)
    reference_points = jax.nn.sigmoid(
        jax.random.normal(ks[2], (bs, nq, R), jnp.float32))
    src_padding_mask = jnp.zeros((bs, L), jnp.bool_).at[1, -8:].set(True)

    layer_params = [init_layer_params(k, C, d_ffn, n_heads, n_levels, n_points)
                    for k in jax.random.split(ks[3], num_layers)]
    ref_point_head_params = init_mlp(ks[4], [R, C, C, C])   # MLP(4, d, d, 3)
    query_scale_params = init_mlp(ks[5], [C, C, C])         # MLP(d, d, d, 2)

    out, ref_out = deformable_transformer_decoder(
        tgt, reference_points, src, src_padding_mask,
        layer_params, ref_point_head_params, query_scale_params,
        spatial_shapes=spatial_shapes, level_start=level_start,
        n_heads=n_heads, n_levels=n_levels, n_points=n_points,
        use_dab=True)                 # tq defaults to nq (single query tile)
    out = jax.block_until_ready(out)

    assert out.shape == (bs, nq, C)
    assert ref_out.shape == (bs, nq, R)
    assert bool(jnp.all(jnp.isfinite(out)))
    print("KERNEL_OK")
</pallas_src>

<mosaic_0001>
module attributes {stable_mosaic.version = 11 : i64} {
  func.func @value_proj_kernel(%arg0: i32, %arg1: i32, %arg2: memref<1x80x32xf32, #tpu.memory_space<vmem>>, %arg3: memref<1x80x1xf32, #tpu.memory_space<vmem>>, %arg4: memref<32x32xbf16, #tpu.memory_space<vmem>>, %arg5: memref<1x32xf32, #tpu.memory_space<vmem>>, %arg6: memref<1x80x32xbf16, #tpu.memory_space<vmem>>) attributes {dimension_semantics = [#tpu.dimension_semantics<parallel>, #tpu.dimension_semantics<parallel>], iteration_bounds = array<i64: 2, 1>, scalar_prefetch = 0 : i64, scratch_operands = 0 : i64, tpu.core_type = #tpu.core_type<tc>, window_params = [{transform_indices = @transform_0, window_bounds = array<i64: 1, 80, 32>}, {transform_indices = @transform_1, window_bounds = array<i64: 1, 80, 1>}, {pipeline_mode = #tpu.pipeline_mode<synchronous>, transform_indices = @transform_2, window_bounds = array<i64: 32, 32>}, {pipeline_mode = #tpu.pipeline_mode<synchronous>, transform_indices = @transform_3, window_bounds = array<i64: 1, 32>}, {transform_indices = @transform_4, window_bounds = array<i64: 1, 80, 32>}]} {
    %c0 = arith.constant 0 : index
    %c0_0 = arith.constant 0 : index
    %c0_1 = arith.constant 0 : index
    %0 = vector.load %arg2[%c0, %c0_0, %c0_1] : memref<1x80x32xf32, #tpu.memory_space<vmem>>, vector<1x80x32xf32>
    %1 = vector.shape_cast %0 : vector<1x80x32xf32> to vector<80x32xf32>
    %2 = arith.truncf %1 : vector<80x32xf32> to vector<80x32xbf16>
    %c0_2 = arith.constant 0 : index
    %c0_3 = arith.constant 0 : index
    %3 = vector.load %arg4[%c0_2, %c0_3] : memref<32x32xbf16, #tpu.memory_space<vmem>>, vector<32x32xbf16>
    %cst = arith.constant dense<0.000000e+00> : vector<80x32xf32>
    %4 = tpu.matmul %2, %3, %cst {dimension_numbers = #tpu.dot_dimension_numbers<[1], [0], [0], [1], [0, 0, 1, 1], [], []>} : vector<80x32xbf16>, vector<32x32xbf16>, vector<80x32xf32> -> vector<80x32xf32>
    %c0_4 = arith.constant 0 : index
    %c0_5 = arith.constant 0 : index
    %5 = vector.load %arg5[%c0_4, %c0_5] : memref<1x32xf32, #tpu.memory_space<vmem>>, vector<1x32xf32>
    %6 = vector.broadcast %5 : vector<1x32xf32> to vector<80x32xf32>
    %7 = arith.addf %4, %6 : vector<80x32xf32>
    %c0_6 = arith.constant 0 : index
    %c0_7 = arith.constant 0 : index
    %c0_8 = arith.constant 0 : index
    %8 = vector.load %arg3[%c0_6, %c0_7, %c0_8] : memref<1x80x1xf32, #tpu.memory_space<vmem>>, vector<1x80x1xf32>
    %9 = vector.shape_cast %8 : vector<1x80x1xf32> to vector<80x1xf32>
    %cst_9 = arith.constant 1.000000e+00 : f32
    %10 = vector.broadcast %cst_9 : f32 to vector<80x1xf32>
    %11 = arith.subf %10, %9 : vector<80x1xf32>
    %12 = vector.broadcast %11 : vector<80x1xf32> to vector<80x32xf32>
    %13 = arith.mulf %7, %12 : vector<80x32xf32>
    %14 = arith.truncf %13 : vector<80x32xf32> to vector<80x32xbf16>
    %c0_10 = arith.constant 0 : index
    %c0_11 = arith.constant 0 : index
    %c0_12 = arith.constant 0 : index
    %15 = vector.load %arg6[%c0_10, %c0_11, %c0_12] : memref<1x80x32xbf16, #tpu.memory_space<vmem>>, vector<1x80x32xbf16>
    %16 = vector.shape_cast %15 : vector<1x80x32xbf16> to vector<80x32xbf16>
    %17 = vector.shape_cast %14 : vector<80x32xbf16> to vector<1x80x32xbf16>
    tpu.vector_store %arg6[%c0_10, %c0_11, %c0_12], %17 {strides = array<i32>} : memref<1x80x32xbf16, #tpu.memory_space<vmem>>, vector<1x80x32xbf16>,
    return
  }
  func.func @transform_0(%arg0: i32, %arg1: i32) -> (i32, i32, i32) {
    %c0_i32 = arith.constant 0 : i32
    %c0_i32_0 = arith.constant 0 : i32
    return %arg0, %arg1, %c0_i32 : i32, i32, i32
  }
  func.func @transform_1(%arg0: i32, %arg1: i32) -> (i32, i32, i32) {
    %c0_i32 = arith.constant 0 : i32
    %c0_i32_0 = arith.constant 0 : i32
    return %arg0, %arg1, %c0_i32 : i32, i32, i32
  }
  func.func @transform_2(%arg0: i32, %arg1: i32) -> (i32, i32) {
    %c0_i32 = arith.constant 0 : i32
    %c0_i32_0 = arith.constant 0 : i32
    %c0_i32_1 = arith.constant 0 : i32
    return %c0_i32, %c0_i32_0 : i32, i32
  }
  func.func @transform_3(%arg0: i32, %arg1: i32) -> (i32, i32) {
    %c0_i32 = arith.constant 0 : i32
    %c0_i32_0 = arith.constant 0 : i32
    %c0_i32_1 = arith.constant 0 : i32
    return %c0_i32, %c0_i32_0 : i32, i32
  }
  func.func @transform_4(%arg0: i32, %arg1: i32) -> (i32, i32, i32) {
    %c0_i32 = arith.constant 0 : i32
    %c0_i32_0 = arith.constant 0 : i32
    return %arg0, %arg1, %c0_i32 : i32, i32, i32
  }
}

</mosaic_0001>

<llo_original>
// kernel: tpu_custom_call.1
$region0: #{tpu_custom_call.1}
  #allocation0 [shape = 'u32[]', space=smem, size = 0x4, offset = 0x4, fixed_abs, tag = 'smem constant byte address 0x4 - core index']
  #allocation1 [shape = 'u32[72,128]{1,0:T(1,128)}', space=vmem, size = 0x9000, scoped, tag = 'internal scratch']
  %s0 = inlined_call_operand.vmem [shape: f32[2,80,32], index: 0, kind: input, shape index: {}]
  %s1 = inlined_call_operand.vmem [shape: f32[2,80,1], index: 1, kind: input, shape index: {}]
  %s2 = inlined_call_operand.vmem [shape: bf16[32,32], index: 2, kind: input, shape index: {}]
  %s3 = inlined_call_operand.vmem [shape: f32[1,32], index: 3, kind: input, shape index: {}]
  %s4 = inlined_call_operand.vmem [shape: bf16[2,80,32], index: 4, kind: output, shape index: {}]
  %s5 = sld [smem:[#allocation0]]
  $region49: #{tpu_custom_call.1} parent=0
    _
  %s7 = ssub.s32 1, %s5
  %s8 = scalar_select 0, %s7, %s5
  loop: start=0, step=1, limit=4
  $region2: #{tpu_custom_call.1} parent=0 // loop_pre_header
    _
  $region3: #{tpu_custom_call.1} parent=0 // loop_header
    %s10 = sphi 0, %s14
    %p11 = scmp.ge.s32.totalorder %s10, 4
    %s17 = sphi 0, %s29
    %s18 = sphi 0, %s25
    %s19 = sphi 0, %s17
    %s20 = sphi 0, %s18
    %s21 = sphi 0, %s19
    %s22 = sphi 0, %s20
    %s34 = sphi 0, %s36
    %s37 = sphi 0, %s34
    %s38 = sphi 0, %s37
    %s54 = sphi 0, %s38
    %s62 = sphi 0, %s64
    %s65 = sphi 0, %s62
    %s66 = sphi 0, %s65
    %s82 = sphi 0, %s66
    %s86 = sphi 0, %s86
    %s88 = sphi 0, %s86
    %s89 = sphi 0, %s88
    %s103 = sphi 0, %s89
    %s107 = sphi 0, %s107
    %s109 = sphi 0, %s107
    %s110 = sphi 0, %s109
    %s124 = sphi 0, %s110
    %s132 = sphi 0, %s134
    %s135 = sphi 0, %s132
    %s136 = sphi 0, %s135
    %s152 = sphi 0, %s136
  $region4: #{tpu_custom_call.1} parent=0 // loop_header_branch
    %13 = sbr.rel (%p11) target = $region8
  $region5: #{tpu_custom_call.1} parent=0 // loop_body
    %s15 = ssub.s32 %s10, 1
    %s16 = ssub.s32 %s10, 2
    %s23 = sadd.s32 1, %s18
    %p24 = scmp.ge.s32.totalorder %s23, 1
    %s25 = scalar_select %p24, 0, %s23
    %s26 = sadd.s32 1, %s17
    %s27 = scalar_select %p24, %s26, %s17
    %p28 = scmp.ge.s32.totalorder %s27, 2
    %s29 = scalar_select %p28, 0, %s27
    %s30 = ssub.s32 %s17, %s29
    %s31 = ssub.s32 %s18, %s25
    %s32 = sor.u32 %s30, %s31
    %p33 = scmp.eq.s32.totalorder %s32, 0
    %s35 = sadd.s32 %s34, 1
    %s36 = scalar_select %p33, %s34, %s35
    %p39 = pneg %p33
    %p40 = scmp.eq.s32.totalorder %s10, 1
    %p41 = por %p39, %p40
    %p42 = scmp.ne.s32.totalorder %s34, %s37
    %p43 = scmp.eq.s32.totalorder %s10, 0
    %p44 = por %p42, %p43
    %p45 = scmp.ne.s32.totalorder %s34, %s37
    %p46 = scmp.eq.s32.totalorder %s15, 1
    %p47 = por %p45, %p46
    %p48 = scmp.ne.s32.totalorder %s37, %s38
    %p49 = scmp.eq.s32.totalorder %s15, 0
    %p50 = por %p48, %p49
    %p51 = scmp.ne.s32.totalorder %s37, %s38
    %p52 = scmp.eq.s32.totalorder %s16, 1
    %p53 = por %p51, %p52
    %p55 = scmp.ne.s32.totalorder %s38, %s54
    %p56 = scmp.eq.s32.totalorder %s16, 0
    %p57 = por %p55, %p56
    %s58 = ssub.s32 %s17, %s29
    %s59 = ssub.s32 %s18, %s25
    %s60 = sor.u32 %s58, %s59
    %p61 = scmp.eq.s32.totalorder %s60, 0
    %s63 = sadd.s32 %s62, 1
    %s64 = scalar_select %p61, %s62, %s63
    %p67 = pneg %p61
    %p68 = scmp.eq.s32.totalorder %s10, 1
    %p69 = por %p67, %p68
    %p70 = scmp.ne.s32.totalorder %s62, %s65
    %p71 = scmp.eq.s32.totalorder %s10, 0
    %p72 = por %p70, %p71
    %p73 = scmp.ne.s32.totalorder %s62, %s65
    %p74 = scmp.eq.s32.totalorder %s15, 1
    %p75 = por %p73, %p74
    %p76 = scmp.ne.s32.totalorder %s65, %s66
    %p77 = scmp.eq.s32.totalorder %s15, 0
    %p78 = por %p76, %p77
    %p79 = scmp.ne.s32.totalorder %s65, %s66
    %p80 = scmp.eq.s32.totalorder %s16, 1
    %p81 = por %p79, %p80
    %p83 = scmp.ne.s32.totalorder %s66, %s82
    %p84 = scmp.eq.s32.totalorder %s16, 0
    %p85 = por %p83, %p84
    %s87 = sadd.s32 %s86, 1
    %p90 = scmp.eq.s32.totalorder %s10, 1
    %p91 = scmp.ne.s32.totalorder %s86, %s88
    %p92 = scmp.eq.s32.totalorder %s10, 0
    %p93 = por %p91, %p92
    %p94 = scmp.ne.s32.totalorder %s86, %s88
    %p95 = scmp.eq.s32.totalorder %s15, 1
    %p96 = por %p94, %p95
    %p97 = scmp.ne.s32.totalorder %s88, %s89
    %p98 = scmp.eq.s32.totalorder %s15, 0
    %p99 = por %p97, %p98
    %p100 = scmp.ne.s32.totalorder %s88, %s89
    %p101 = scmp.eq.s32.totalorder %s16, 1
    %p102 = por %p100, %p101
    %p104 = scmp.ne.s32.totalorder %s89, %s103
    %p105 = scmp.eq.s32.totalorder %s16, 0
    %p106 = por %p104, %p105
    %s108 = sadd.s32 %s107, 1
    %p111 = scmp.eq.s32.totalorder %s10, 1
    %p112 = scmp.ne.s32.totalorder %s107, %s109
    %p113 = scmp.eq.s32.totalorder %s10, 0
    %p114 = por %p112, %p113
    %p115 = scmp.ne.s32.totalorder %s107, %s109
    %p116 = scmp.eq.s32.totalorder %s15, 1
    %p117 = por %p115, %p116
    %p118 = scmp.ne.s32.totalorder %s109, %s110
    %p119 = scmp.eq.s32.totalorder %s15, 0
    %p120 = por %p118, %p119
    %p121 = scmp.ne.s32.totalorder %s109, %s110
    %p122 = scmp.eq.s32.totalorder %s16, 1
    %p123 = por %p121, %p122
    %p125 = scmp.ne.s32.totalorder %s110, %s124
    %p126 = scmp.eq.s32.totalorder %s16, 0
    %p127 = por %p125, %p126
    %s128 = ssub.s32 %s17, %s29
    %s129 = ssub.s32 %s18, %s25
    %s130 = sor.u32 %s128, %s129
    %p131 = scmp.eq.s32.totalorder %s130, 0
    %s133 = sadd.s32 %s132, 1
    %s134 = scalar_select %p131, %s132, %s133
    %p137 = pneg %p131
    %p138 = scmp.eq.s32.totalorder %s10, 1
    %p139 = por %p137, %p138
    %p140 = scmp.ne.s32.totalorder %s132, %s135
    %p141 = scmp.eq.s32.totalorder %s10, 0
    %p142 = por %p140, %p141
    %p143 = scmp.ne.s32.totalorder %s132, %s135
    %p144 = scmp.eq.s32.totalorder %s15, 1
    %p145 = por %p143, %p144
    %p146 = scmp.ne.s32.totalorder %s135, %s136
    %p147 = scmp.eq.s32.totalorder %s15, 0
    %p148 = por %p146, %p147
    %p149 = scmp.ne.s32.totalorder %s135, %s136
    %p150 = scmp.eq.s32.totalorder %s16, 1
    %p151 = por %p149, %p150
    %p153 = scmp.ne.s32.totalorder %s136, %s152
    %p154 = scmp.eq.s32.totalorder %s16, 0
    %p155 = por %p153, %p154
    %p156 = scmp.le.s32.totalorder 1, %s10
    %p157 = scmp.lt.s32.totalorder %s10, 3
    %p158 = pnand %p156, %p157
    %p159 = pneg %p158
    // Predicated region
    $region9: #{tpu_custom_call.1} parent=5 // pred_check
      _
    $region10: #{tpu_custom_call.1} parent=5 // pred_check_branch
      %161 = sbr.rel (%p158) target = $region12
    $region11: #{tpu_custom_call.1} parent=5 // pred_region
      %s162 = ssub.s32 %s10, 1
      // Predicated region
      $region13: #{tpu_custom_call.1} parent=11 // pred_check
        %p163 = pneg %p99
      $region14: #{tpu_custom_call.1} parent=11 // pred_check_branch
        %165 = sbr.rel (%p163) target = $region16
      $region15: #{tpu_custom_call.1} parent=11 // pred_region
        _
      $region16: #{tpu_custom_call.1} parent=11 // pred_fallthru
        _
      // Predicated region
      $region17: #{tpu_custom_call.1} parent=11 // pred_check
        %p166 = pneg %p120
      $region18: #{tpu_custom_call.1} parent=11 // pred_check_branch
        %168 = sbr.rel (%p166) target = $region20
      $region19: #{tpu_custom_call.1} parent=11 // pred_region
        _
      $region20: #{tpu_custom_call.1} parent=11 // pred_fallthru
        _
    $region12: #{tpu_custom_call.1} parent=5 // pred_fallthru
      _
    %p169 = scmp.lt.s32.totalorder %s10, 2
    // Predicated region
    $region21: #{tpu_custom_call.1} parent=5 // pred_check
      %p170 = pneg %p169
    $region22: #{tpu_custom_call.1} parent=5 // pred_check_branch
      %172 = sbr.rel (%p170) target = $region24
    $region23: #{tpu_custom_call.1} parent=5 // pred_region
      // Predicated region
      $region25: #{tpu_custom_call.1} parent=23 // pred_check
        %p173 = pneg %p44
      $region26: #{tpu_custom_call.1} parent=23 // pred_check_branch
        %175 = sbr.rel (%p173) target = $region28
      $region27: #{tpu_custom_call.1} parent=23 // pred_region
        %s176 = smul.u32 10, %s18
        %p177 = scmp.lt.s32.totalorder %s17, 1
        %s178 = scalar_select %p177, %s17, 1
        %p179 = scmp.lt.s32.totalorder %s176, 9
        %s180 = scalar_select %p179, %s176, 9
        %s181 = smul.addr %s178, 10
        %s182 = sadd.s32 %s180, %s181
        %s183 = smul.addr %s182, 8
        %s184 = scalar_lea.vmem %s0, %s183
        %s185 = smul.u32 10, %s18
      $region28: #{tpu_custom_call.1} parent=23 // pred_fallthru
        _
      // Predicated region
      $region29: #{tpu_custom_call.1} parent=23 // pred_check
        %p186 = pneg %p72
      $region30: #{tpu_custom_call.1} parent=23 // pred_check_branch
        %188 = sbr.rel (%p186) target = $region32
      $region31: #{tpu_custom_call.1} parent=23 // pred_region
        %s189 = smul.u32 10, %s18
        %p190 = scmp.lt.s32.totalorder %s17, 1
        %s191 = scalar_select %p190, %s17, 1
        %p192 = scmp.lt.s32.totalorder %s189, 9
        %s193 = scalar_select %p192, %s189, 9
        %s194 = smul.addr %s191, 10
        %s195 = sadd.s32 %s193, %s194
        %s196 = smul.addr %s195, 8
        %s197 = scalar_lea.vmem %s1, %s196
        %s198 = smul.u32 10, %s18
      $region32: #{tpu_custom_call.1} parent=23 // pred_fallthru
        _
    $region24: #{tpu_custom_call.1} parent=5 // pred_fallthru
      _
    %p199 = scmp.le.s32.totalorder 1, %s10
    %p200 = scmp.lt.s32.totalorder %s10, 3
    %p201 = pnand %p199, %p200
    %p202 = pneg %p201
    // Predicated region
    $region33: #{tpu_custom_call.1} parent=5 // pred_check
      _
    $region34: #{tpu_custom_call.1} parent=5 // pred_check_branch
      %204 = sbr.rel (%p201) target = $region36
    $region35: #{tpu_custom_call.1} parent=5 // pred_region
      %s205 = ssub.s32 %s10, 1
      %s206 = smul.u32 10, %s20
      %p207 = scmp.lt.s32.totalorder %s19, 1
      %s208 = scalar_select %p207, %s19, 1
      %p209 = scmp.lt.s32.totalorder %s206, 9
      %s210 = scalar_select %p209, %s206, 9
      %s211 = smul.addr %s208, 10
      %s212 = sadd.s32 %s210, %s211
      %s213 = smul.addr %s212, 8
      %s214 = scalar_lea.vmem %s0, %s213
      %p215 = pneg %p50
      %p216 = pneg %p47
      %s217 = smul.u32 10, %s20
      %p218 = scmp.lt.s32.totalorder %s19, 1
      %s219 = scalar_select %p218, %s19, 1
      %p220 = scmp.lt.s32.totalorder %s217, 9
      %s221 = scalar_select %p220, %s217, 9
      %s222 = smul.addr %s219, 10
      %s223 = sadd.s32 %s221, %s222
      %s224 = smul.addr %s223, 8
      %s225 = scalar_lea.vmem %s1, %s224
      %p226 = pneg %p78
      %p227 = pneg %p75
      %p228 = pneg %p99
      %p229 = pneg %p96
      %p230 = pneg %p120
      %p231 = pneg %p117
      %p232 = pneg %p148
      %p233 = pneg %p145
      %s234 = smul.u32 10, %s20
      %p235 = scmp.lt.s32.totalorder %s19, 1
      %s236 = scalar_select %p235, %s19, 1
      %p237 = scmp.lt.s32.totalorder %s234, 9
      %s238 = scalar_select %p237, %s234, 9
      %s239 = smul.addr %s236, 10
      %s240 = sadd.s32 %s238, %s239
      %s241 = smul.addr %s240, 4
      %s242 = scalar_lea.vmem %s4, %s241
      %s243 = smul.u32 10, %s20
      %p244 = scmp.lt.s32.totalorder %s19, 1
      %s245 = scalar_select %p244, %s19, 1
      %p246 = scmp.lt.s32.totalorder %s243, 9
      %s247 = scalar_select %p246, %s243, 9
      %s248 = smul.addr %s245, 10
      %s249 = sadd.s32 %s247, %s248
      %s250 = smul.addr %s249, 8
      %s251 = scalar_lea.vmem %s0, %s250
      %s252 = smul.u32 10, %s20
      %s253 = smul.u32 10, %s20
      %p254 = scmp.lt.s32.totalorder %s19, 1
      %s255 = scalar_select %p254, %s19, 1
      %p256 = scmp.lt.s32.totalorder %s253, 9
      %s257 = scalar_select %p256, %s253, 9
      %s258 = smul.addr %s255, 10
      %s259 = sadd.s32 %s257, %s258
      %s260 = smul.addr %s259, 8
      %s261 = scalar_lea.vmem %s1, %s260
      %s262 = smul.u32 10, %s20
      %s263 = smul.u32 10, %s20
      %p264 = scmp.lt.s32.totalorder %s19, 1
      %s265 = scalar_select %p264, %s19, 1
      %p266 = scmp.lt.s32.totalorder %s263, 9
      %s267 = scalar_select %p266, %s263, 9
      %s268 = smul.addr %s265, 10
      %s269 = sadd.s32 %s267, %s268
      %s270 = smul.addr %s269, 4
      %s271 = scalar_lea.vmem %s4, %s270
      %s272 = smul.u32 10, %s20
      %v274 = vld [vmem:[%s251] sm:$0xff]
      %v275 = vld [vmem:[%s251 + $0x8] sm:$0xff]
      %v276 = vld [vmem:[%s251 + $0x10] sm:$0xff]
      %v277 = vld [vmem:[%s251 + $0x18] sm:$0xff]
      %v278 = vld [vmem:[%s251 + $0x20] sm:$0xff]
      %v279 = vld [vmem:[%s251 + $0x28] sm:$0xff]
      %v280 = vld [vmem:[%s251 + $0x30] sm:$0xff]
      %v281 = vld [vmem:[%s251 + $0x38] sm:$0xff]
      %v282 = vld [vmem:[%s251 + $0x40] sm:$0xff]
      %v283 = vld [vmem:[%s251 + $0x48] sm:$0xff]
      %v284 = vpack.c.bf16 %v275, %v274
      %v285 = vpack.c.bf16 %v277, %v276
      %v286 = vpack.c.bf16 %v279, %v278
      %v287 = vpack.c.bf16 %v281, %v280
      %v288 = vpack.c.bf16 %v283, %v282
      %v289 = vld [vmem:[%s2] sm:$0xf]
      %v290 = vld [vmem:[%s2 + $0x4] sm:$0xf]
      %v291 = vld [vmem:[%s2 + $0x8] sm:$0xf]
      %v292 = vld [vmem:[%s2 + $0xc] sm:$0xf]
      %v293 = vld [vmem:[%s3] sm:$0x1]
      %v295 = vperm.slane %v293, 0
      %v301 = vunpack.c.l.b16 %v289
      %v302 = vunpack.c.l.b16 %v290
      %v303 = vunpack.c.l.b16 %v291
      %v304 = vunpack.c.l.b16 %v292
      %v305 = vpack.c.b16 %v302, %v301
      %v306 = vpack.c.b16 %v304, %v303
      %vm309 = vcmask 261120
      %v311 = vsel %vm309, %v284, 0
      %v314 = vsel %vm309, %v285, 0
      %v317 = vsel %vm309, %v286, 0
      %v320 = vsel %vm309, %v287, 0
      %v323 = vsel %vm309, %v288, 0
      %325 = vmatpush.bf16.msra.mxu0 0
      %326 = vmatpush.bf16.msra.mxu0 0
      %327 = vmatpush.bf16.msra.mxu0 0
      %328 = vmatpush.bf16.msra.mxu0 0
      %329 = vmatpush.bf16.msra.mxu0 0
      %330 = vmatpush.bf16.msra.mxu0 0
      %331 = vmatpush.bf16.msra.mxu0 %v306
      %332 = vmatpush.bf16.msra.mxu0 %v305
      %333 = vmatmul.bf16.gmra.mxu0 %v311
      %v334 = vpop.f32.mrf.mxu0
      %v335 = vadd.f32 %v295, %v334
      %v336 = vpop.f32.mrf.mxu0
      %v337 = vadd.f32 %v295, %v336
      %338 = vmatmul.bf16.gmra.mxu0 %v314
      %v339 = vpop.f32.mrf.mxu0
      %v340 = vadd.f32 %v295, %v339
      %v341 = vpop.f32.mrf.mxu0
      %v342 = vadd.f32 %v295, %v341
      %343 = vmatmul.bf16.gmra.mxu0 %v317
      %v344 = vpop.f32.mrf.mxu0
      %v345 = vadd.f32 %v295, %v344
      %v346 = vpop.f32.mrf.mxu0
      %v347 = vadd.f32 %v295, %v346
      %348 = vmatmul.bf16.gmra.mxu0 %v320
      %v349 = vpop.f32.mrf.mxu0
      %v350 = vadd.f32 %v295, %v349
      %v351 = vpop.f32.mrf.mxu0
      %v352 = vadd.f32 %v295, %v351
      %353 = vmatmul.bf16.gmra.mxu0 %v323
      %v354 = vpop.f32.mrf.mxu0
      %v355 = vadd.f32 %v295, %v354
      %v356 = vpop.f32.mrf.mxu0
      %v357 = vadd.f32 %v295, %v356
      %358 = vdwg.mxu0
      %v359 = vld [vmem:[%s261] sm:$0xff]
      %v360 = vld [vmem:[%s261 + $0x8] sm:$0xff]
      %v361 = vld [vmem:[%s261 + $0x10] sm:$0xff]
      %v362 = vld [vmem:[%s261 + $0x18] sm:$0xff]
      %v363 = vld [vmem:[%s261 + $0x20] sm:$0xff]
      %v364 = vld [vmem:[%s261 + $0x28] sm:$0xff]
      %v365 = vld [vmem:[%s261 + $0x30] sm:$0xff]
      %v366 = vld [vmem:[%s261 + $0x38] sm:$0xff]
      %v367 = vld [vmem:[%s261 + $0x40] sm:$0xff]
      %v368 = vld [vmem:[%s261 + $0x48] sm:$0xff]
      %v369 = vsub.f32 1.0, %v359
      %v370 = vsub.f32 1.0, %v360
      %v371 = vsub.f32 1.0, %v361
      %v372 = vsub.f32 1.0, %v362
      %v373 = vsub.f32 1.0, %v363
      %v374 = vsub.f32 1.0, %v364
      %v375 = vsub.f32 1.0, %v365
      %v376 = vsub.f32 1.0, %v366
      %v377 = vsub.f32 1.0, %v367
      %v378 = vsub.f32 1.0, %v368
      %380 = vset.pattern.permute.xlu0 0
      %381 = vperm.xlu0 %380, %v369
      %v382 = vpop.permute.xlu0 %381
      %385 = vset.pattern.permute.xlu0 0
      %386 = vperm.xlu0 %385, %v370
      %v387 = vpop.permute.xlu0 %386
      %390 = vset.pattern.permute.xlu0 0
      %391 = vperm.xlu0 %390, %v371
      %v392 = vpop.permute.xlu0 %391
      %395 = vset.pattern.permute.xlu0 0
      %396 = vperm.xlu0 %395, %v372
      %v397 = vpop.permute.xlu0 %396
      %400 = vset.pattern.permute.xlu0 0
      %401 = vperm.xlu0 %400, %v373
      %v402 = vpop.permute.xlu0 %401
      %405 = vset.pattern.permute.xlu0 0
      %406 = vperm.xlu0 %405, %v374
      %v407 = vpop.permute.xlu0 %406
      %410 = vset.pattern.permute.xlu0 0
      %411 = vperm.xlu0 %410, %v375
      %v412 = vpop.permute.xlu0 %411
      %415 = vset.pattern.permute.xlu0 0
      %416 = vperm.xlu0 %415, %v376
      %v417 = vpop.permute.xlu0 %416
      %420 = vset.pattern.permute.xlu0 0
      %421 = vperm.xlu0 %420, %v377
      %v422 = vpop.permute.xlu0 %421
      %425 = vset.pattern.permute.xlu0 0
      %426 = vperm.xlu0 %425, %v378
      %v427 = vpop.permute.xlu0 %426
      %v429 = vmul.f32 %v335, %v382
      %v430 = vmul.f32 %v337, %v387
      %v431 = vmul.f32 %v340, %v392
      %v432 = vmul.f32 %v342, %v397
      %v433 = vmul.f32 %v345, %v402
      %v434 = vmul.f32 %v347, %v407
      %v435 = vmul.f32 %v350, %v412
      %v436 = vmul.f32 %v352, %v417
      %v437 = vmul.f32 %v355, %v422
      %v438 = vmul.f32 %v357, %v427
      %v439 = vpack.c.bf16 %v429, %v429
      %v440 = vpack.c.bf16 %v430, %v430
      %v441 = vpack.c.bf16 %v431, %v431
      %v442 = vpack.c.bf16 %v432, %v432
      %v443 = vpack.c.bf16 %v433, %v433
      %v444 = vpack.c.bf16 %v434, %v434
      %v445 = vpack.c.bf16 %v435, %v435
      %v446 = vpack.c.bf16 %v436, %v436
      %v447 = vpack.c.bf16 %v437, %v437
      %v448 = vpack.c.bf16 %v438, %v438
      %vm449 = vcmask 257024
      %450 = vst.msk [vmem:[%s271] sm:$0xf] %vm449, %v439
      %451 = vst.msk [vmem:[%s271 + $0x4] sm:$0xf] %vm449, %v440
      %452 = vst.msk [vmem:[%s271 + $0x8] sm:$0xf] %vm449, %v441
      %453 = vst.msk [vmem:[%s271 + $0xc] sm:$0xf] %vm449, %v442
      %454 = vst.msk [vmem:[%s271 + $0x10] sm:$0xf] %vm449, %v443
      %455 = vst.msk [vmem:[%s271 + $0x14] sm:$0xf] %vm449, %v444
      %456 = vst.msk [vmem:[%s271 + $0x18] sm:$0xf] %vm449, %v445
      %457 = vst.msk [vmem:[%s271 + $0x1c] sm:$0xf] %vm449, %v446
      %458 = vst.msk [vmem:[%s271 + $0x20] sm:$0xf] %vm449, %v447
      %459 = vst.msk [vmem:[%s271 + $0x24] sm:$0xf] %vm449, %v448
      %s460 = smul.u32 10, %s20
      %p461 = scmp.lt.s32.totalorder %s19, 1
      %s462 = scalar_select %p461, %s19, 1
      %p463 = scmp.lt.s32.totalorder %s460, 9
      %s464 = scalar_select %p463, %s460, 9
      %s465 = smul.addr %s462, 10
      %s466 = sadd.s32 %s464, %s465
      %s467 = smul.addr %s466, 4
      %s468 = scalar_lea.vmem %s4, %s467
      // Predicated region
      $region37: #{tpu_custom_call.1} parent=35 // pred_check
        %p469 = pneg %p145
      $region38: #{tpu_custom_call.1} parent=35 // pred_check_branch
        %471 = sbr.rel (%p469) target = $region40
      $region39: #{tpu_custom_call.1} parent=35 // pred_region
        %s472 = smul.u32 10, %s20
      $region40: #{tpu_custom_call.1} parent=35 // pred_fallthru
        _
    $region36: #{tpu_custom_call.1} parent=5 // pred_fallthru
      _
    %p473 = scmp.le.s32.totalorder 2, %s10
    // Predicated region
    $region41: #{tpu_custom_call.1} parent=5 // pred_check
      %p474 = pneg %p473
    $region42: #{tpu_custom_call.1} parent=5 // pred_check_branch
      %476 = sbr.rel (%p474) target = $region44
    $region43: #{tpu_custom_call.1} parent=5 // pred_region
      %s477 = ssub.s32 %s10, 2
      // Predicated region
      $region45: #{tpu_custom_call.1} parent=43 // pred_check
        %p478 = pneg %p151
      $region46: #{tpu_custom_call.1} parent=43 // pred_check_branch
        %480 = sbr.rel (%p478) target = $region48
      $region47: #{tpu_custom_call.1} parent=43 // pred_region
        %s481 = smul.u32 10, %s22
        %p482 = scmp.lt.s32.totalorder %s21, 1
        %s483 = scalar_select %p482, %s21, 1
        %p484 = scmp.lt.s32.totalorder %s481, 9
        %s485 = scalar_select %p484, %s481, 9
        %s486 = smul.addr %s483, 10
        %s487 = sadd.s32 %s485, %s486
        %s488 = smul.addr %s487, 4
        %s489 = scalar_lea.vmem %s4, %s488
      $region48: #{tpu_custom_call.1} parent=43 // pred_fallthru
        _
    $region44: #{tpu_custom_call.1} parent=5 // pred_fallthru
      _
  $region6: #{tpu_custom_call.1} parent=0 // loop_footer
    %s14 = sadd.s32 1, %s10
  $region7: #{tpu_custom_call.1} parent=0 // loop_footer_branch
    %9 = sbr.rel target = $region3
  $region8: #{tpu_custom_call.1} parent=0 // loop_exit
    _

</llo_original>
